<compile_context>
chip_gen: v7x
topology: tpu7x:2x2x1
jax: 0.10.0
libtpu: 0.0.40
codegen_flags: <defaults>
</compile_context>

<pallas_src>
import math
from functools import partial

import jax
import jax.numpy as jnp
from jax.experimental import pallas as pl
from jax.experimental.pallas import tpu as pltpu


# ------------------------------- helpers --------------------------------------

def _round_up(v, m):
    return ((v + m - 1) // m) * m


def _pad2(a, rows, cols):
    return jnp.pad(a, ((0, rows - a.shape[0]), (0, cols - a.shape[1])))


def _feat_pad(d):
    # Lane-dense padding for *resident* hidden feature dims: 128 for small dims,
    # 256 once the real dim is >= 256 (fills a v6e/v7x 256x256 MXU pass).
    return _round_up(d, 256 if d >= 256 else 128)


def _row_pack(dtype):
    # Sublane packing factor: 8 rows (f32), 16 (bf16), 32 (int8/fp8).
    return max(8, 32 // jnp.dtype(dtype).itemsize)


def _pick_tile_n(n, requested, pack):
    """Row-tile size: multiple of the sublane pack; prefer >= 4 grid steps when
    n allows (pipeline depth + balanced work across v7x's 2 TensorCores)."""
    t = _round_up(max(pack, min(requested, _round_up(n, pack))), pack)
    while t > pack and _round_up(n, t) // t < 4 and _round_up(n, pack) >= 4 * pack:
        t = max(pack, _round_up(t // 2, pack))
    return t


# ----------------------------- Pallas kernel ----------------------------------

def _make_fused_mlp_kernel(num_layers, epilogue_dtype, compute_dtype):
    """Fused MLP over one row tile.

    Ref order: x, w_0 ... w_{L-1}, [bh (packed hidden biases, L>1)], b_last, out
    Eval-mode BatchNorm is pre-folded into (w, b) in prepare_gpr_mlp, so each
    hidden layer is matmul + bias + ReLU; the last layer is matmul + bias.
    """

    def kernel(*refs):
        x_ref = refs[0]
        w_refs = refs[1:1 + num_layers]
        pos = 1 + num_layers
        if num_layers > 1:
            bh_ref = refs[pos]
            pos += 1
        bl_ref = refs[pos]
        o_ref = refs[pos + 1]

        h = x_ref[...]                                     # (tile_n, in_c) compute dtype
        for li in range(num_layers - 1):                   # unrolled at trace time
            y = jnp.dot(h, w_refs[li][...], preferred_element_type=jnp.float32)
            b = bh_ref[li].astype(epilogue_dtype)          # (h_pad,) row, tiny cast
            # bias + ReLU in epilogue_dtype (bf16 on v6e/v7x halves vreg traffic;
            # pass f32 on v5e).
            h = jnp.maximum(y.astype(epilogue_dtype) + b, 0).astype(compute_dtype)
        y = jnp.dot(h, w_refs[-1][...], preferred_element_type=jnp.float32)
        o_ref[...] = (y + bl_ref[...]).astype(o_ref.dtype)  # narrow (tile_n, out_c) store

    return kernel


# ------------------------------ param folding ----------------------------------

def _fold_params(params):
    """Fold eval-mode BatchNorm into the linear layers.

    ReLU(x W + b) * scale + shift == ReLU(x (W*scale) + (b*scale)) + shift,
    valid only for scale > 0 (asserted); the +shift is folded into the NEXT
    layer's bias: (z + shift) W' + b' == z W' + (shift W' + b').
    """
    lins, bns = params["lins"], params["bns"]
    ws, bs = [], []
    carry_shift = None
    for i, (w, b) in enumerate(lins):
        w = w.astype(jnp.float32)
        b = b.astype(jnp.float32)
        if i < len(lins) - 1:
            scale, shift = bns[i]
            assert bool(jnp.all(scale > 0)), (
                "BN scale must be > 0 for the ReLU/scale fold (trained gamma <= 0 "
                "is not supported by this fused path)")
            w = w * scale                 # scale columns (out features)
            b = b * scale
        else:
            shift = None
        if carry_shift is not None:
            b = b + carry_shift @ w       # fold previous BN shift into this bias
        carry_shift = shift
        ws.append(w)
        bs.append(b)
    return ws, bs


def prepare_gpr_mlp(params, compute_dtype=jnp.bfloat16):
    """One-time fold / pad / cast of the parameters (hoisted out of the call path).

    Returns a pytree consumed by gpr_mlp_forward:
      ws: tuple of padded weights in compute_dtype
          (in_c, h_pad), (h_pad, h_pad)*, (h_pad, out_c)  -- K of layer 0 and N of
          the last layer are NOT padded (narrow HBM / narrow writeback).
      bh: packed hidden biases (L-1, h_pad) f32, or None if num_layers == 1
      bl: last-layer bias (1, out_c) f32
    """
    ws, bs = _fold_params(params)
    num_layers = len(ws)

    ws_p = []
    for i, w in enumerate(ws):
        fi = w.shape[0] if i == 0 else _feat_pad(w.shape[0])
        fo = w.shape[1] if i == num_layers - 1 else _feat_pad(w.shape[1])
        ws_p.append(_pad2(w, fi, fo).astype(compute_dtype))

    if num_layers > 1:
        h_pad = ws_p[0].shape[1]
        bh = jnp.concatenate([_pad2(b, 1, h_pad) for b in bs[:-1]], axis=0)  # (L-1, h_pad) f32
    else:
        bh = None
    bl = bs[-1]                                                              # (1, out_c) f32

    return {"ws": tuple(ws_p), "bh": bh, "bl": bl}


# -------------------------------- forward --------------------------------------

@partial(jax.jit, static_argnames=("tile_n", "epilogue_dtype", "store_dtype"))
def _forward_impl(x, ws, bh, bl, *, tile_n, epilogue_dtype, store_dtype):
    n, in_c = x.shape
    num_layers = len(ws)
    compute_dtype = ws[0].dtype
    out_c = ws[-1].shape[1]
    epi = jnp.dtype(epilogue_dtype)
    st = jnp.dtype(store_dtype)

    n_pad = _round_up(n, tile_n)
    num_tiles = n_pad // tile_n

    # x keeps its real feature width in HBM (no 128-pad of K); only rows padded.
    x_p = jnp.pad(x.astype(compute_dtype), ((0, n_pad - n), (0, 0)))

    inputs = [x_p]
    in_specs = [pl.BlockSpec((tile_n, in_c), lambda i: (i, 0))]
    for w in ws:
        # Resident across the whole grid (constant index_map -> fetched once).
        # TODO(synk): pipeline_mode=pl.Buffered(1) would halve resident-weight
        #             VMEM for large hidden widths (matters on v7x's 64 MiB);
        #             left at the default since it is irrelevant at these sizes.
        inputs.append(w)
        in_specs.append(pl.BlockSpec(w.shape, lambda i: (0, 0)))
    if bh is not None:
        inputs.append(bh)
        in_specs.append(pl.BlockSpec(bh.shape, lambda i: (0, 0)))
    inputs.append(bl)
    in_specs.append(pl.BlockSpec(bl.shape, lambda i: (0, 0)))

    # VMEM budget from the actual footprint, capped per generation
    # (~48 MiB on v7x's 64 MiB, up to ~96 MiB on v5e/v6e's 128 MiB).
    w_bytes = sum(int(w.size) * w.dtype.itemsize for w in ws)
    b_bytes = int(bl.size) * 4 + (int(bh.size) * 4 if bh is not None else 0)
    tile_bytes = 2 * (tile_n * in_c * jnp.dtype(compute_dtype).itemsize
                      + tile_n * out_c * st.itemsize)
    act_bytes = 4 * tile_n * max(w.shape[1] for w in ws) * 4
    need = 2 * (w_bytes + b_bytes) + tile_bytes + act_bytes + (4 << 20)
    try:
        cap = pltpu.get_tpu_info().vmem_capacity_bytes
    except Exception:
        cap = 64 << 20
    vmem_limit = int(min(0.75 * cap, max(need, 32 << 20)))

    flops = 2 * n_pad * sum(w.shape[0] * w.shape[1] for w in ws)
    bytes_accessed = int(x_p.size * x_p.dtype.itemsize + w_bytes + b_bytes
                         + n_pad * out_c * st.itemsize)

    out = pl.pallas_call(
        _make_fused_mlp_kernel(num_layers, epi, compute_dtype),
        out_shape=jax.ShapeDtypeStruct((n_pad, out_c), st),
        grid=(num_tiles,),
        in_specs=in_specs,
        out_specs=pl.BlockSpec((tile_n, out_c), lambda i: (i, 0)),
        compiler_params=pltpu.CompilerParams(
            dimension_semantics=("parallel",),
            vmem_limit_bytes=vmem_limit,
        ),
        cost_estimate=pl.CostEstimate(
            flops=flops, transcendentals=0, bytes_accessed=bytes_accessed),
    )(*inputs)

    return out[:n].astype(x.dtype)


def gpr_mlp_forward(x, prepped, *, tile_n=256, epilogue_dtype=None, store_dtype=None):
    """Eval-mode forward of GPR_MLP as one fused Pallas kernel.

    prepped: output of prepare_gpr_mlp (fold/pad/cast done once per checkpoint).
    epilogue_dtype: dtype for the hidden bias+ReLU epilogue (defaults to the
                    compute dtype; pass jnp.float32 on v5e — no bf16 VALU).
    store_dtype:    HBM writeback dtype of the kernel output (defaults to the
                    compute dtype; the result is cast back to x.dtype).
    """
    ws, bh, bl = prepped["ws"], prepped["bh"], prepped["bl"]
    compute_dtype = ws[0].dtype
    if epilogue_dtype is None:
        epilogue_dtype = compute_dtype
    if store_dtype is None:
        store_dtype = compute_dtype
    tile = _pick_tile_n(x.shape[0], tile_n, _row_pack(compute_dtype))
    return _forward_impl(
        x, ws, bh, bl,
        tile_n=tile,
        epilogue_dtype=jnp.dtype(epilogue_dtype).name,
        store_dtype=jnp.dtype(store_dtype).name)


# --------------------------- parameter init -------------------------------------

def _linear_params(key, fan_in, fan_out):
    """PyTorch nn.Linear default init: U(-1/sqrt(fan_in), 1/sqrt(fan_in))."""
    kw, kb = jax.random.split(key)
    bound = 1.0 / math.sqrt(fan_in)
    w = jax.random.uniform(kw, (fan_in, fan_out), jnp.float32, -bound, bound)
    b = jax.random.uniform(kb, (1, fan_out), jnp.float32, -bound, bound)
    return w, b


def _bn_eval_affine(h, eps):
    # default BatchNorm1d: gamma=1, beta=0, running_mean=0, running_var=1
    gamma = jnp.ones((1, h), jnp.float32)
    beta = jnp.zeros((1, h), jnp.float32)
    running_mean = jnp.zeros((1, h), jnp.float32)
    running_var = jnp.ones((1, h), jnp.float32)
    scale = gamma / jnp.sqrt(running_var + eps)   # > 0, so the ReLU/scale fold is valid
    shift = beta - running_mean * scale
    return scale, shift


def build_params(key, in_channels, hidden_channels, out_channels, num_layers, eps=1e-5):
    lins, bns = [], []
    if num_layers == 1:
        key, sub = jax.random.split(key)
        lins.append(_linear_params(sub, in_channels, out_channels))
    else:
        key, sub = jax.random.split(key)
        lins.append(_linear_params(sub, in_channels, hidden_channels))
        bns.append(_bn_eval_affine(hidden_channels, eps))
        for _ in range(num_layers - 2):
            key, sub = jax.random.split(key)
            lins.append(_linear_params(sub, hidden_channels, hidden_channels))
            bns.append(_bn_eval_affine(hidden_channels, eps))
        key, sub = jax.random.split(key)
        lins.append(_linear_params(sub, hidden_channels, out_channels))
    return {"lins": lins, "bns": bns}


# ------------------------------- reference --------------------------------------

def gpr_mlp_reference(x, params):
    lins, bns = params["lins"], params["bns"]
    for i in range(len(lins) - 1):
        w, b = lins[i]
        scale, shift = bns[i]
        x = jnp.maximum(x @ w + b, 0.0) * scale + shift   # dropout = identity (eval)
    w, b = lins[-1]
    return x @ w + b


# --------------------------------- main ------------------------------------------

if __name__ == "__main__":
    key = jax.random.PRNGKey(0)
    k_x, k_p = jax.random.split(key)

    N, IN_C, HID_C, OUT_C, NUM_LAYERS = 1000, 16, 32, 8, 3
    x = jax.random.normal(k_x, (N, IN_C), jnp.float32)
    params = build_params(k_p, IN_C, HID_C, OUT_C, NUM_LAYERS)

    ref = gpr_mlp_reference(x, params)

    # f32 path: tight check against the reference semantics.
    prep_f32 = prepare_gpr_mlp(params, compute_dtype=jnp.float32)
    out_f32 = jax.block_until_ready(gpr_mlp_forward(x, prep_f32))
    assert out_f32.shape == (N, OUT_C)
    assert jnp.allclose(out_f32, ref, atol=1e-4, rtol=1e-4)

    # bf16 compute / f32 accumulate, bf16 epilogue + bf16 writeback (v6e/v7x fast path).
    prep_bf16 = prepare_gpr_mlp(params, compute_dtype=jnp.bfloat16)
    out_bf16 = jax.block_until_ready(gpr_mlp_forward(x, prep_bf16))
    assert out_bf16.shape == (N, OUT_C)
    assert jnp.allclose(out_bf16, ref, atol=5e-2, rtol=5e-2)

    print("KERNEL_OK")
</pallas_src>

<mosaic_0001>
module attributes {stable_mosaic.version = 11 : i64} {
  func.func @kernel(%arg0: i32, %arg1: memref<256x16xf32, #tpu.memory_space<vmem>>, %arg2: memref<16x128xf32, #tpu.memory_space<vmem>>, %arg3: memref<128x128xf32, #tpu.memory_space<vmem>>, %arg4: memref<128x8xf32, #tpu.memory_space<vmem>>, %arg5: memref<2x128xf32, #tpu.memory_space<vmem>>, %arg6: memref<1x8xf32, #tpu.memory_space<vmem>>, %arg7: memref<256x8xf32, #tpu.memory_space<vmem>>) attributes {dimension_semantics = [#tpu.dimension_semantics<parallel>], iteration_bounds = array<i64: 4>, scalar_prefetch = 0 : i64, scratch_operands = 0 : i64, tpu.core_type = #tpu.core_type<tc>, window_params = [{transform_indices = @transform_0, window_bounds = array<i64: 256, 16>}, {pipeline_mode = #tpu.pipeline_mode<synchronous>, transform_indices = @transform_1, window_bounds = array<i64: 16, 128>}, {pipeline_mode = #tpu.pipeline_mode<synchronous>, transform_indices = @transform_2, window_bounds = array<i64: 128, 128>}, {pipeline_mode = #tpu.pipeline_mode<synchronous>, transform_indices = @transform_3, window_bounds = array<i64: 128, 8>}, {pipeline_mode = #tpu.pipeline_mode<synchronous>, transform_indices = @transform_4, window_bounds = array<i64: 2, 128>}, {pipeline_mode = #tpu.pipeline_mode<synchronous>, transform_indices = @transform_5, window_bounds = array<i64: 1, 8>}, {transform_indices = @transform_6, window_bounds = array<i64: 256, 8>}]} {
    %c0 = arith.constant 0 : index
    %c0_0 = arith.constant 0 : index
    %0 = vector.load %arg1[%c0, %c0_0] : memref<256x16xf32, #tpu.memory_space<vmem>>, vector<256x16xf32>
    %c0_1 = arith.constant 0 : index
    %c0_2 = arith.constant 0 : index
    %1 = vector.load %arg2[%c0_1, %c0_2] : memref<16x128xf32, #tpu.memory_space<vmem>>, vector<16x128xf32>
    %cst = arith.constant dense<0.000000e+00> : vector<256x128xf32>
    %2 = tpu.matmul %0, %1, %cst {dimension_numbers = #tpu.dot_dimension_numbers<[1], [0], [0], [1], [0, 0, 1, 1], [], []>} : vector<256x16xf32>, vector<16x128xf32>, vector<256x128xf32> -> vector<256x128xf32>
    %c0_3 = arith.constant 0 : index
    %c0_4 = arith.constant 0 : index
    %3 = vector.load %arg5[%c0_3, %c0_4] : memref<2x128xf32, #tpu.memory_space<vmem>>, vector<1x128xf32>
    %4 = vector.shape_cast %3 : vector<1x128xf32> to vector<128xf32>
    %5 = vector.shape_cast %4 : vector<128xf32> to vector<1x128xf32>
    %6 = vector.broadcast %5 : vector<1x128xf32> to vector<256x128xf32>
    %7 = arith.addf %2, %6 : vector<256x128xf32>
    %cst_5 = arith.constant 0.000000e+00 : f32
    %8 = vector.broadcast %cst_5 : f32 to vector<256x128xf32>
    %9 = arith.maximumf %7, %8 : vector<256x128xf32>
    %c0_6 = arith.constant 0 : index
    %c0_7 = arith.constant 0 : index
    %10 = vector.load %arg3[%c0_6, %c0_7] : memref<128x128xf32, #tpu.memory_space<vmem>>, vector<128x128xf32>
    %cst_8 = arith.constant dense<0.000000e+00> : vector<256x128xf32>
    %11 = tpu.matmul %9, %10, %cst_8 {dimension_numbers = #tpu.dot_dimension_numbers<[1], [0], [0], [1], [0, 0, 1, 1], [], []>} : vector<256x128xf32>, vector<128x128xf32>, vector<256x128xf32> -> vector<256x128xf32>
    %c1 = arith.constant 1 : index
    %c0_9 = arith.constant 0 : index
    %12 = vector.load %arg5[%c1, %c0_9] : memref<2x128xf32, #tpu.memory_space<vmem>>, vector<1x128xf32>
    %13 = vector.shape_cast %12 : vector<1x128xf32> to vector<128xf32>
    %14 = vector.shape_cast %13 : vector<128xf32> to vector<1x128xf32>
    %15 = vector.broadcast %14 : vector<1x128xf32> to vector<256x128xf32>
    %16 = arith.addf %11, %15 : vector<256x128xf32>
    %cst_10 = arith.constant 0.000000e+00 : f32
    %17 = vector.broadcast %cst_10 : f32 to vector<256x128xf32>
    %18 = arith.maximumf %16, %17 : vector<256x128xf32>
    %c0_11 = arith.constant 0 : index
    %c0_12 = arith.constant 0 : index
    %19 = vector.load %arg4[%c0_11, %c0_12] : memref<128x8xf32, #tpu.memory_space<vmem>>, vector<128x8xf32>
    %cst_13 = arith.constant dense<0.000000e+00> : vector<256x8xf32>
    %20 = tpu.matmul %18, %19, %cst_13 {dimension_numbers = #tpu.dot_dimension_numbers<[1], [0], [0], [1], [0, 0, 1, 1], [], []>} : vector<256x128xf32>, vector<128x8xf32>, vector<256x8xf32> -> vector<256x8xf32>
    %c0_14 = arith.constant 0 : index
    %c0_15 = arith.constant 0 : index
    %21 = vector.load %arg6[%c0_14, %c0_15] : memref<1x8xf32, #tpu.memory_space<vmem>>, vector<1x8xf32>
    %22 = vector.broadcast %21 : vector<1x8xf32> to vector<256x8xf32>
    %23 = arith.addf %20, %22 : vector<256x8xf32>
    %c0_16 = arith.constant 0 : index
    %c0_17 = arith.constant 0 : index
    %24 = vector.load %arg7[%c0_16, %c0_17] : memref<256x8xf32, #tpu.memory_space<vmem>>, vector<256x8xf32>
    tpu.vector_store %arg7[%c0_16, %c0_17], %23 {strides = array<i32>} : memref<256x8xf32, #tpu.memory_space<vmem>>, vector<256x8xf32>,
    return
  }
  func.func @transform_0(%arg0: i32) -> (i32, i32) {
    %c0_i32 = arith.constant 0 : i32
    %c0_i32_0 = arith.constant 0 : i32
    return %arg0, %c0_i32 : i32, i32
  }
  func.func @transform_1(%arg0: i32) -> (i32, i32) {
    %c0_i32 = arith.constant 0 : i32
    %c0_i32_0 = arith.constant 0 : i32
    %c0_i32_1 = arith.constant 0 : i32
    return %c0_i32, %c0_i32_0 : i32, i32
  }
  func.func @transform_2(%arg0: i32) -> (i32, i32) {
    %c0_i32 = arith.constant 0 : i32
    %c0_i32_0 = arith.constant 0 : i32
    %c0_i32_1 = arith.constant 0 : i32
    return %c0_i32, %c0_i32_0 : i32, i32
  }
  func.func @transform_3(%arg0: i32) -> (i32, i32) {
    %c0_i32 = arith.constant 0 : i32
    %c0_i32_0 = arith.constant 0 : i32
    %c0_i32_1 = arith.constant 0 : i32
    return %c0_i32, %c0_i32_0 : i32, i32
  }
  func.func @transform_4(%arg0: i32) -> (i32, i32) {
    %c0_i32 = arith.constant 0 : i32
    %c0_i32_0 = arith.constant 0 : i32
    %c0_i32_1 = arith.constant 0 : i32
    return %c0_i32, %c0_i32_0 : i32, i32
  }
  func.func @transform_5(%arg0: i32) -> (i32, i32) {
    %c0_i32 = arith.constant 0 : i32
    %c0_i32_0 = arith.constant 0 : i32
    %c0_i32_1 = arith.constant 0 : i32
    return %c0_i32, %c0_i32_0 : i32, i32
  }
  func.func @transform_6(%arg0: i32) -> (i32, i32) {
    %c0_i32 = arith.constant 0 : i32
    %c0_i32_0 = arith.constant 0 : i32
    return %arg0, %c0_i32 : i32, i32
  }
}

</mosaic_0001>

<llo_original>
// kernel: _forward_impl.1
$region0: #{_forward_impl.1}
  #allocation0 [shape = 'u32[]', space=smem, size = 0x4, offset = 0x4, fixed_abs, tag = 'smem constant byte address 0x4 - core index']
  #allocation1 [shape = 'u32[144,128]{1,0:T(1,128)}', space=vmem, size = 0x12000, scoped, tag = 'internal scratch']
  %s0 = inlined_call_operand.vmem [shape: f32[1024,16], index: 0, kind: input, shape index: {}]
  %s1 = inlined_call_operand.vmem [shape: f32[16,128], index: 1, kind: input, shape index: {}]
  %s2 = inlined_call_operand.vmem [shape: f32[128,128], index: 2, kind: input, shape index: {}]
  %s3 = inlined_call_operand.vmem [shape: f32[128,8], index: 3, kind: input, shape index: {}]
  %s4 = inlined_call_operand.vmem [shape: f32[2,128], index: 4, kind: input, shape index: {}]
  %s5 = inlined_call_operand.vmem [shape: f32[1,8], index: 5, kind: input, shape index: {}]
  %s6 = inlined_call_operand.vmem [shape: f32[1024,8], index: 6, kind: output, shape index: {}]
  %s7 = sld [smem:[#allocation0]]
  $region57: #{_forward_impl.1} parent=0
    _
  %s9 = ssub.s32 1, %s7
  %s10 = scalar_select 0, %s9, %s7
  loop: start=0, step=1, limit=6
  $region2: #{_forward_impl.1} parent=0 // loop_pre_header
    _
  $region3: #{_forward_impl.1} parent=0 // loop_header
    %s12 = sphi 0, %s16
    %p13 = scmp.ge.s32.totalorder %s12, 6
    %s22 = sphi 0, %s24
    %s25 = sphi 0, %s22
    %s26 = sphi 0, %s25
    %s42 = sphi 0, %s26
    %s46 = sphi 0, %s46
    %s48 = sphi 0, %s46
    %s49 = sphi 0, %s48
    %s63 = sphi 0, %s49
    %s67 = sphi 0, %s67
    %s69 = sphi 0, %s67
    %s70 = sphi 0, %s69
    %s84 = sphi 0, %s70
    %s88 = sphi 0, %s88
    %s90 = sphi 0, %s88
    %s91 = sphi 0, %s90
    %s105 = sphi 0, %s91
    %s109 = sphi 0, %s109
    %s111 = sphi 0, %s109
    %s112 = sphi 0, %s111
    %s126 = sphi 0, %s112
    %s130 = sphi 0, %s130
    %s132 = sphi 0, %s130
    %s133 = sphi 0, %s132
    %s147 = sphi 0, %s133
    %s153 = sphi 0, %s155
    %s156 = sphi 0, %s153
    %s157 = sphi 0, %s156
    %s173 = sphi 0, %s157
  $region4: #{_forward_impl.1} parent=0 // loop_header_branch
    %15 = sbr.rel (%p13) target = $region8
  $region5: #{_forward_impl.1} parent=0 // loop_body
    %s17 = ssub.s32 %s12, 1
    %s18 = ssub.s32 %s12, 2
    %s19 = sadd.s32 %s12, 1
    %s20 = ssub.s32 %s12, %s19
    %p21 = scmp.eq.s32.totalorder %s20, 0
    %s23 = sadd.s32 %s22, 1
    %s24 = scalar_select %p21, %s22, %s23
    %p27 = pneg %p21
    %p28 = scmp.eq.s32.totalorder %s12, 3
    %p29 = por %p27, %p28
    %p30 = scmp.ne.s32.totalorder %s22, %s25
    %p31 = scmp.eq.s32.totalorder %s12, 0
    %p32 = por %p30, %p31
    %p33 = scmp.ne.s32.totalorder %s22, %s25
    %p34 = scmp.eq.s32.totalorder %s17, 3
    %p35 = por %p33, %p34
    %p36 = scmp.ne.s32.totalorder %s25, %s26
    %p37 = scmp.eq.s32.totalorder %s17, 0
    %p38 = por %p36, %p37
    %p39 = scmp.ne.s32.totalorder %s25, %s26
    %p40 = scmp.eq.s32.totalorder %s18, 3
    %p41 = por %p39, %p40
    %p43 = scmp.ne.s32.totalorder %s26, %s42
    %p44 = scmp.eq.s32.totalorder %s18, 0
    %p45 = por %p43, %p44
    %s47 = sadd.s32 %s46, 1
    %p50 = scmp.eq.s32.totalorder %s12, 3
    %p51 = scmp.ne.s32.totalorder %s46, %s48
    %p52 = scmp.eq.s32.totalorder %s12, 0
    %p53 = por %p51, %p52
    %p54 = scmp.ne.s32.totalorder %s46, %s48
    %p55 = scmp.eq.s32.totalorder %s17, 3
    %p56 = por %p54, %p55
    %p57 = scmp.ne.s32.totalorder %s48, %s49
    %p58 = scmp.eq.s32.totalorder %s17, 0
    %p59 = por %p57, %p58
    %p60 = scmp.ne.s32.totalorder %s48, %s49
    %p61 = scmp.eq.s32.totalorder %s18, 3
    %p62 = por %p60, %p61
    %p64 = scmp.ne.s32.totalorder %s49, %s63
    %p65 = scmp.eq.s32.totalorder %s18, 0
    %p66 = por %p64, %p65
    %s68 = sadd.s32 %s67, 1
    %p71 = scmp.eq.s32.totalorder %s12, 3
    %p72 = scmp.ne.s32.totalorder %s67, %s69
    %p73 = scmp.eq.s32.totalorder %s12, 0
    %p74 = por %p72, %p73
    %p75 = scmp.ne.s32.totalorder %s67, %s69
    %p76 = scmp.eq.s32.totalorder %s17, 3
    %p77 = por %p75, %p76
    %p78 = scmp.ne.s32.totalorder %s69, %s70
    %p79 = scmp.eq.s32.totalorder %s17, 0
    %p80 = por %p78, %p79
    %p81 = scmp.ne.s32.totalorder %s69, %s70
    %p82 = scmp.eq.s32.totalorder %s18, 3
    %p83 = por %p81, %p82
    %p85 = scmp.ne.s32.totalorder %s70, %s84
    %p86 = scmp.eq.s32.totalorder %s18, 0
    %p87 = por %p85, %p86
    %s89 = sadd.s32 %s88, 1
    %p92 = scmp.eq.s32.totalorder %s12, 3
    %p93 = scmp.ne.s32.totalorder %s88, %s90
    %p94 = scmp.eq.s32.totalorder %s12, 0
    %p95 = por %p93, %p94
    %p96 = scmp.ne.s32.totalorder %s88, %s90
    %p97 = scmp.eq.s32.totalorder %s17, 3
    %p98 = por %p96, %p97
    %p99 = scmp.ne.s32.totalorder %s90, %s91
    %p100 = scmp.eq.s32.totalorder %s17, 0
    %p101 = por %p99, %p100
    %p102 = scmp.ne.s32.totalorder %s90, %s91
    %p103 = scmp.eq.s32.totalorder %s18, 3
    %p104 = por %p102, %p103
    %p106 = scmp.ne.s32.totalorder %s91, %s105
    %p107 = scmp.eq.s32.totalorder %s18, 0
    %p108 = por %p106, %p107
    %s110 = sadd.s32 %s109, 1
    %p113 = scmp.eq.s32.totalorder %s12, 3
    %p114 = scmp.ne.s32.totalorder %s109, %s111
    %p115 = scmp.eq.s32.totalorder %s12, 0
    %p116 = por %p114, %p115
    %p117 = scmp.ne.s32.totalorder %s109, %s111
    %p118 = scmp.eq.s32.totalorder %s17, 3
    %p119 = por %p117, %p118
    %p120 = scmp.ne.s32.totalorder %s111, %s112
    %p121 = scmp.eq.s32.totalorder %s17, 0
    %p122 = por %p120, %p121
    %p123 = scmp.ne.s32.totalorder %s111, %s112
    %p124 = scmp.eq.s32.totalorder %s18, 3
    %p125 = por %p123, %p124
    %p127 = scmp.ne.s32.totalorder %s112, %s126
    %p128 = scmp.eq.s32.totalorder %s18, 0
    %p129 = por %p127, %p128
    %s131 = sadd.s32 %s130, 1
    %p134 = scmp.eq.s32.totalorder %s12, 3
    %p135 = scmp.ne.s32.totalorder %s130, %s132
    %p136 = scmp.eq.s32.totalorder %s12, 0
    %p137 = por %p135, %p136
    %p138 = scmp.ne.s32.totalorder %s130, %s132
    %p139 = scmp.eq.s32.totalorder %s17, 3
    %p140 = por %p138, %p139
    %p141 = scmp.ne.s32.totalorder %s132, %s133
    %p142 = scmp.eq.s32.totalorder %s17, 0
    %p143 = por %p141, %p142
    %p144 = scmp.ne.s32.totalorder %s132, %s133
    %p145 = scmp.eq.s32.totalorder %s18, 3
    %p146 = por %p144, %p145
    %p148 = scmp.ne.s32.totalorder %s133, %s147
    %p149 = scmp.eq.s32.totalorder %s18, 0
    %p150 = por %p148, %p149
    %s151 = ssub.s32 %s12, %s19
    %p152 = scmp.eq.s32.totalorder %s151, 0
    %s154 = sadd.s32 %s153, 1
    %s155 = scalar_select %p152, %s153, %s154
    %p158 = pneg %p152
    %p159 = scmp.eq.s32.totalorder %s12, 3
    %p160 = por %p158, %p159
    %p161 = scmp.ne.s32.totalorder %s153, %s156
    %p162 = scmp.eq.s32.totalorder %s12, 0
    %p163 = por %p161, %p162
    %p164 = scmp.ne.s32.totalorder %s153, %s156
    %p165 = scmp.eq.s32.totalorder %s17, 3
    %p166 = por %p164, %p165
    %p167 = scmp.ne.s32.totalorder %s156, %s157
    %p168 = scmp.eq.s32.totalorder %s17, 0
    %p169 = por %p167, %p168
    %p170 = scmp.ne.s32.totalorder %s156, %s157
    %p171 = scmp.eq.s32.totalorder %s18, 3
    %p172 = por %p170, %p171
    %p174 = scmp.ne.s32.totalorder %s157, %s173
    %p175 = scmp.eq.s32.totalorder %s18, 0
    %p176 = por %p174, %p175
    %p177 = scmp.le.s32.totalorder 1, %s12
    %p178 = scmp.lt.s32.totalorder %s12, 5
    %p179 = pnand %p177, %p178
    %p180 = pneg %p179
    // Predicated region
    $region9: #{_forward_impl.1} parent=5 // pred_check
      _
    $region10: #{_forward_impl.1} parent=5 // pred_check_branch
      %182 = sbr.rel (%p179) target = $region12
    $region11: #{_forward_impl.1} parent=5 // pred_region
      %s183 = ssub.s32 %s12, 1
      // Predicated region
      $region13: #{_forward_impl.1} parent=11 // pred_check
        %p184 = pneg %p59
      $region14: #{_forward_impl.1} parent=11 // pred_check_branch
        %186 = sbr.rel (%p184) target = $region16
      $region15: #{_forward_impl.1} parent=11 // pred_region
        _
      $region16: #{_forward_impl.1} parent=11 // pred_fallthru
        _
      // Predicated region
      $region17: #{_forward_impl.1} parent=11 // pred_check
        %p187 = pneg %p80
      $region18: #{_forward_impl.1} parent=11 // pred_check_branch
        %189 = sbr.rel (%p187) target = $region20
      $region19: #{_forward_impl.1} parent=11 // pred_region
        _
      $region20: #{_forward_impl.1} parent=11 // pred_fallthru
        _
      // Predicated region
      $region21: #{_forward_impl.1} parent=11 // pred_check
        %p190 = pneg %p101
      $region22: #{_forward_impl.1} parent=11 // pred_check_branch
        %192 = sbr.rel (%p190) target = $region24
      $region23: #{_forward_impl.1} parent=11 // pred_region
        _
      $region24: #{_forward_impl.1} parent=11 // pred_fallthru
        _
      // Predicated region
      $region25: #{_forward_impl.1} parent=11 // pred_check
        %p193 = pneg %p122
      $region26: #{_forward_impl.1} parent=11 // pred_check_branch
        %195 = sbr.rel (%p193) target = $region28
      $region27: #{_forward_impl.1} parent=11 // pred_region
        _
      $region28: #{_forward_impl.1} parent=11 // pred_fallthru
        _
      // Predicated region
      $region29: #{_forward_impl.1} parent=11 // pred_check
        %p196 = pneg %p143
      $region30: #{_forward_impl.1} parent=11 // pred_check_branch
        %198 = sbr.rel (%p196) target = $region32
      $region31: #{_forward_impl.1} parent=11 // pred_region
        _
      $region32: #{_forward_impl.1} parent=11 // pred_fallthru
        _
    $region12: #{_forward_impl.1} parent=5 // pred_fallthru
      _
    %p199 = scmp.lt.s32.totalorder %s12, 4
    // Predicated region
    $region33: #{_forward_impl.1} parent=5 // pred_check
      %p200 = pneg %p199
    $region34: #{_forward_impl.1} parent=5 // pred_check_branch
      %202 = sbr.rel (%p200) target = $region36
    $region35: #{_forward_impl.1} parent=5 // pred_region
      // Predicated region
      $region37: #{_forward_impl.1} parent=35 // pred_check
        %p203 = pneg %p32
      $region38: #{_forward_impl.1} parent=35 // pred_check_branch
        %205 = sbr.rel (%p203) target = $region40
      $region39: #{_forward_impl.1} parent=35 // pred_region
        %s206 = smul.u32 32, %s12
        %p207 = scmp.lt.s32.totalorder %s206, 127
        %s208 = scalar_select %p207, %s206, 127
        %s209 = smul.addr %s208, 8
        %s210 = scalar_lea.vmem %s0, %s209
        %s211 = smul.u32 32, %s12
      $region40: #{_forward_impl.1} parent=35 // pred_fallthru
        _
    $region36: #{_forward_impl.1} parent=5 // pred_fallthru
      _
    %p212 = scmp.le.s32.totalorder 1, %s12
    %p213 = scmp.lt.s32.totalorder %s12, 5
    %p214 = pnand %p212, %p213
    %p215 = pneg %p214
    // Predicated region
    $region41: #{_forward_impl.1} parent=5 // pred_check
      _
    $region42: #{_forward_impl.1} parent=5 // pred_check_branch
      %217 = sbr.rel (%p214) target = $region44
    $region43: #{_forward_impl.1} parent=5 // pred_region
      %s218 = ssub.s32 %s12, 1
      %s219 = smul.u32 32, %s17
      %p220 = scmp.lt.s32.totalorder %s219, 127
      %s221 = scalar_select %p220, %s219, 127
      %s222 = smul.addr %s221, 8
      %s223 = scalar_lea.vmem %s0, %s222
      %p224 = pneg %p38
      %p225 = pneg %p35
      %p226 = pneg %p59
      %p227 = pneg %p56
      %p228 = pneg %p80
      %p229 = pneg %p77
      %p230 = pneg %p101
      %p231 = pneg %p98
      %p232 = pneg %p122
      %p233 = pneg %p119
      %p234 = pneg %p143
      %p235 = pneg %p140
      %p236 = pneg %p169
      %p237 = pneg %p166
      %s238 = smul.u32 32, %s17
      %p239 = scmp.lt.s32.totalorder %s238, 127
      %s240 = scalar_select %p239, %s238, 127
      %s241 = smul.addr %s240, 8
      %s242 = scalar_lea.vmem %s6, %s241
      %s243 = smul.u32 32, %s17
      %p244 = scmp.lt.s32.totalorder %s243, 127
      %s245 = scalar_select %p244, %s243, 127
      %s246 = smul.addr %s245, 8
      %s247 = scalar_lea.vmem %s0, %s246
      %s248 = smul.u32 32, %s17
      %s249 = smul.u32 32, %s17
      %p250 = scmp.lt.s32.totalorder %s249, 127
      %s251 = scalar_select %p250, %s249, 127
      %s252 = smul.addr %s251, 8
      %s253 = scalar_lea.vmem %s6, %s252
      %s254 = smul.u32 32, %s17
      %v255 = vld [vmem:[%s247] sm:$0xff]
      %v256 = vld [vmem:[%s247 + $0x8] sm:$0xff]
      %v257 = vld [vmem:[%s247 + $0x10] sm:$0xff]
      %v258 = vld [vmem:[%s247 + $0x18] sm:$0xff]
      %v259 = vld [vmem:[%s247 + $0x20] sm:$0xff]
      %v260 = vld [vmem:[%s247 + $0x28] sm:$0xff]
      %v261 = vld [vmem:[%s247 + $0x30] sm:$0xff]
      %v262 = vld [vmem:[%s247 + $0x38] sm:$0xff]
      %v263 = vld [vmem:[%s247 + $0x40] sm:$0xff]
      %v264 = vld [vmem:[%s247 + $0x48] sm:$0xff]
      %v265 = vld [vmem:[%s247 + $0x50] sm:$0xff]
      %v266 = vld [vmem:[%s247 + $0x58] sm:$0xff]
      %v267 = vld [vmem:[%s247 + $0x60] sm:$0xff]
      %v268 = vld [vmem:[%s247 + $0x68] sm:$0xff]
      %v269 = vld [vmem:[%s247 + $0x70] sm:$0xff]
      %v270 = vld [vmem:[%s247 + $0x78] sm:$0xff]
      %v271 = vld [vmem:[%s247 + $0x80] sm:$0xff]
      %v272 = vld [vmem:[%s247 + $0x88] sm:$0xff]
      %v273 = vld [vmem:[%s247 + $0x90] sm:$0xff]
      %v274 = vld [vmem:[%s247 + $0x98] sm:$0xff]
      %v275 = vld [vmem:[%s247 + $0xa0] sm:$0xff]
      %v276 = vld [vmem:[%s247 + $0xa8] sm:$0xff]
      %v277 = vld [vmem:[%s247 + $0xb0] sm:$0xff]
      %v278 = vld [vmem:[%s247 + $0xb8] sm:$0xff]
      %v279 = vld [vmem:[%s247 + $0xc0] sm:$0xff]
      %v280 = vld [vmem:[%s247 + $0xc8] sm:$0xff]
      %v281 = vld [vmem:[%s247 + $0xd0] sm:$0xff]
      %v282 = vld [vmem:[%s247 + $0xd8] sm:$0xff]
      %v283 = vld [vmem:[%s247 + $0xe0] sm:$0xff]
      %v284 = vld [vmem:[%s247 + $0xe8] sm:$0xff]
      %v285 = vld [vmem:[%s247 + $0xf0] sm:$0xff]
      %v286 = vld [vmem:[%s247 + $0xf8] sm:$0xff]
      %v287 = vld [vmem:[%s1] sm:$0xff]
      %v288 = vld [vmem:[%s1 + $0x8] sm:$0xff]
      %v289 = vld [vmem:[%s4] sm:$0x1]
      %v290 = vlaneseq
      %v291 = vshrl.u32 %v290, 7
      %v292 = vsub.s32 0, %v291
      %v293 = vrot.slane %v289, %v292
      %vm294 = vcmask 130048
      %v296 = vsel %vm294, %v255, 0
      %v299 = vsel %vm294, %v256, 0
      %v302 = vsel %vm294, %v257, 0
      %v305 = vsel %vm294, %v258, 0
      %v308 = vsel %vm294, %v259, 0
      %v311 = vsel %vm294, %v260, 0
      %v314 = vsel %vm294, %v261, 0
      %v317 = vsel %vm294, %v262, 0
      %v320 = vsel %vm294, %v263, 0
      %v323 = vsel %vm294, %v264, 0
      %v326 = vsel %vm294, %v265, 0
      %v329 = vsel %vm294, %v266, 0
      %v332 = vsel %vm294, %v267, 0
      %v335 = vsel %vm294, %v268, 0
      %v338 = vsel %vm294, %v269, 0
      %v341 = vsel %vm294, %v270, 0
      %v344 = vsel %vm294, %v271, 0
      %v347 = vsel %vm294, %v272, 0
      %v350 = vsel %vm294, %v273, 0
      %v353 = vsel %vm294, %v274, 0
      %v356 = vsel %vm294, %v275, 0
      %v359 = vsel %vm294, %v276, 0
      %v362 = vsel %vm294, %v277, 0
      %v365 = vsel %vm294, %v278, 0
      %v368 = vsel %vm294, %v279, 0
      %v371 = vsel %vm294, %v280, 0
      %v374 = vsel %vm294, %v281, 0
      %v377 = vsel %vm294, %v282, 0
      %v380 = vsel %vm294, %v283, 0
      %v383 = vsel %vm294, %v284, 0
      %v386 = vsel %vm294, %v285, 0
      %v389 = vsel %vm294, %v286, 0
      %391 = vmatprep.subr.mxu0 0.0
      %392 = vmatpush1.msra.mxu0 %v287
      %393 = vmatprep.subr.mxu0 0.0
      %394 = vmatpush1.msra.mxu0 %v288
      %395 = vmatprep.subr.mxu0 0.0
      %396 = vmatpush1.msra.mxu0 0.0
      %397 = vmatprep.subr.mxu0 0.0
      %398 = vmatpush1.msra.mxu0 0.0
      %399 = vmatprep.subr.mxu0 0.0
      %400 = vmatpush1.msra.mxu0 0.0
      %401 = vmatprep.subr.mxu0 0.0
      %402 = vmatpush1.msra.mxu0 0.0
      %403 = vmatprep.subr.mxu0 0.0
      %404 = vmatpush1.msra.mxu0 0.0
      %405 = vmatprep.subr.mxu0 0.0
      %406 = vmatpush1.msra.mxu0 0.0
      %407 = vmatprep.subr.mxu0 0.0
      %408 = vmatpush1.msra.mxu0 0.0
      %409 = vmatprep.subr.mxu0 0.0
      %410 = vmatpush1.msra.mxu0 0.0
      %411 = vmatprep.subr.mxu0 0.0
      %412 = vmatpush1.msra.mxu0 0.0
      %413 = vmatprep.subr.mxu0 0.0
      %414 = vmatpush1.msra.mxu0 0.0
      %415 = vmatprep.subr.mxu0 0.0
      %416 = vmatpush1.msra.mxu0 0.0
      %417 = vmatprep.subr.mxu0 0.0
      %418 = vmatpush1.msra.mxu0 0.0
      %419 = vmatprep.subr.mxu0 0.0
      %420 = vmatpush1.msra.mxu0 0.0
      %421 = vmatprep.subr.mxu0 0.0
      %422 = vmatpush1.msra.mxu0 0.0
      %423 = vmatprep.subr.mxu0 0.0
      %424 = vmatpush1.msra.mxu0 0.0
      %425 = vmatprep.subr.mxu0 0.0
      %426 = vmatpush1.msra.mxu0 0.0
      %427 = vmatprep.subr.mxu0 0.0
      %428 = vmatpush1.msra.mxu0 0.0
      %429 = vmatprep.subr.mxu0 0.0
      %430 = vmatpush1.msra.mxu0 0.0
      %431 = vmatprep.subr.mxu0 0.0
      %432 = vmatpush1.msra.mxu0 0.0
      %433 = vmatprep.subr.mxu0 0.0
      %434 = vmatpush1.msra.mxu0 0.0
      %435 = vmatprep.subr.mxu0 0.0
      %436 = vmatpush1.msra.mxu0 0.0
      %437 = vmatprep.subr.mxu0 0.0
      %438 = vmatpush1.msra.mxu0 0.0
      %439 = vmatprep.subr.mxu0 0.0
      %440 = vmatpush1.msra.mxu0 0.0
      %441 = vmatprep.subr.mxu0 0.0
      %442 = vmatpush1.msra.mxu0 0.0
      %443 = vmatprep.subr.mxu0 0.0
      %444 = vmatpush1.msra.mxu0 0.0
      %445 = vmatprep.subr.mxu0 0.0
      %446 = vmatpush1.msra.mxu0 0.0
      %447 = vmatprep.subr.mxu0 0.0
      %448 = vmatpush1.msra.mxu0 0.0
      %449 = vmatprep.subr.mxu0 0.0
      %450 = vmatpush1.msra.mxu0 0.0
      %451 = vmatprep.subr.mxu0 0.0
      %452 = vmatpush1.msra.mxu0 0.0
      %453 = vmatprep.subr.mxu0 0.0
      %454 = vmatpush1.msra.mxu0 0.0
      %455 = vmatprep.mubr.f32.mxu0 0.0
      %456 = vmatmul.mubr.f32.gmra.mrb[0].mxu0 %v296
      %v457 = vpop.f32.mrb[0].mxu0
      %v458 = vadd.f32 %v293, %v457
      %v459 = vpop.f32.mrb[0].mxu0
      %460 = vmatprep.mubr.f32.mxu0 0.0
      %461 = vmatmul.mubr.f32.gmra.mrb[0].mxu0 %v299
      %v462 = vpop.f32.mrb[0].mxu0
      %v463 = vadd.f32 %v293, %v462
      %v464 = vpop.f32.mrb[0].mxu0
      %465 = vmatprep.mubr.f32.mxu0 0.0
      %466 = vmatmul.mubr.f32.gmra.mrb[0].mxu0 %v302
      %v467 = vpop.f32.mrb[0].mxu0
      %v468 = vadd.f32 %v293, %v467
      %v469 = vpop.f32.mrb[0].mxu0
      %470 = vmatprep.mubr.f32.mxu0 0.0
      %471 = vmatmul.mubr.f32.gmra.mrb[0].mxu0 %v305
      %v472 = vpop.f32.mrb[0].mxu0
      %v473 = vadd.f32 %v293, %v472
      %v474 = vpop.f32.mrb[0].mxu0
      %475 = vmatprep.mubr.f32.mxu0 0.0
      %476 = vmatmul.mubr.f32.gmra.mrb[0].mxu0 %v308
      %v477 = vpop.f32.mrb[0].mxu0
      %v478 = vadd.f32 %v293, %v477
      %v479 = vpop.f32.mrb[0].mxu0
      %480 = vmatprep.mubr.f32.mxu0 0.0
      %481 = vmatmul.mubr.f32.gmra.mrb[0].mxu0 %v311
      %v482 = vpop.f32.mrb[0].mxu0
      %v483 = vadd.f32 %v293, %v482
      %v484 = vpop.f32.mrb[0].mxu0
      %485 = vmatprep.mubr.f32.mxu0 0.0
      %486 = vmatmul.mubr.f32.gmra.mrb[0].mxu0 %v314
      %v487 = vpop.f32.mrb[0].mxu0
      %v488 = vadd.f32 %v293, %v487
      %v489 = vpop.f32.mrb[0].mxu0
      %490 = vmatprep.mubr.f32.mxu0 0.0
      %491 = vmatmul.mubr.f32.gmra.mrb[0].mxu0 %v317
      %v492 = vpop.f32.mrb[0].mxu0
      %v493 = vadd.f32 %v293, %v492
      %v494 = vpop.f32.mrb[0].mxu0
      %495 = vmatprep.mubr.f32.mxu0 0.0
      %496 = vmatmul.mubr.f32.gmra.mrb[0].mxu0 %v320
      %v497 = vpop.f32.mrb[0].mxu0
      %v498 = vadd.f32 %v293, %v497
      %v499 = vpop.f32.mrb[0].mxu0
      %500 = vmatprep.mubr.f32.mxu0 0.0
      %501 = vmatmul.mubr.f32.gmra.mrb[0].mxu0 %v323
      %v502 = vpop.f32.mrb[0].mxu0
      %v503 = vadd.f32 %v293, %v502
      %v504 = vpop.f32.mrb[0].mxu0
      %505 = vmatprep.mubr.f32.mxu0 0.0
      %506 = vmatmul.mubr.f32.gmra.mrb[0].mxu0 %v326
      %v507 = vpop.f32.mrb[0].mxu0
      %v508 = vadd.f32 %v293, %v507
      %v509 = vpop.f32.mrb[0].mxu0
      %510 = vmatprep.mubr.f32.mxu0 0.0
      %511 = vmatmul.mubr.f32.gmra.mrb[0].mxu0 %v329
      %v512 = vpop.f32.mrb[0].mxu0
      %v513 = vadd.f32 %v293, %v512
      %v514 = vpop.f32.mrb[0].mxu0
      %515 = vmatprep.mubr.f32.mxu0 0.0
      %516 = vmatmul.mubr.f32.gmra.mrb[0].mxu0 %v332
      %v517 = vpop.f32.mrb[0].mxu0
      %v518 = vadd.f32 %v293, %v517
      %v519 = vpop.f32.mrb[0].mxu0
      %520 = vmatprep.mubr.f32.mxu0 0.0
      %521 = vmatmul.mubr.f32.gmra.mrb[0].mxu0 %v335
      %v522 = vpop.f32.mrb[0].mxu0
      %v523 = vadd.f32 %v293, %v522
      %v524 = vpop.f32.mrb[0].mxu0
      %525 = vmatprep.mubr.f32.mxu0 0.0
      %526 = vmatmul.mubr.f32.gmra.mrb[0].mxu0 %v338
      %v527 = vpop.f32.mrb[0].mxu0
      %v528 = vadd.f32 %v293, %v527
      %v529 = vpop.f32.mrb[0].mxu0
      %530 = vmatprep.mubr.f32.mxu0 0.0
      %531 = vmatmul.mubr.f32.gmra.mrb[0].mxu0 %v341
      %v532 = vpop.f32.mrb[0].mxu0
      %v533 = vadd.f32 %v293, %v532
      %v534 = vpop.f32.mrb[0].mxu0
      %535 = vmatprep.mubr.f32.mxu0 0.0
      %536 = vmatmul.mubr.f32.gmra.mrb[0].mxu0 %v344
      %v537 = vpop.f32.mrb[0].mxu0
      %v538 = vadd.f32 %v293, %v537
      %v539 = vpop.f32.mrb[0].mxu0
      %540 = vmatprep.mubr.f32.mxu0 0.0
      %541 = vmatmul.mubr.f32.gmra.mrb[0].mxu0 %v347
      %v542 = vpop.f32.mrb[0].mxu0
      %v543 = vadd.f32 %v293, %v542
      %v544 = vpop.f32.mrb[0].mxu0
      %545 = vmatprep.mubr.f32.mxu0 0.0
      %546 = vmatmul.mubr.f32.gmra.mrb[0].mxu0 %v350
      %v547 = vpop.f32.mrb[0].mxu0
      %v548 = vadd.f32 %v293, %v547
      %v549 = vpop.f32.mrb[0].mxu0
      %550 = vmatprep.mubr.f32.mxu0 0.0
      %551 = vmatmul.mubr.f32.gmra.mrb[0].mxu0 %v353
      %v552 = vpop.f32.mrb[0].mxu0
      %v553 = vadd.f32 %v293, %v552
      %v554 = vpop.f32.mrb[0].mxu0
      %555 = vmatprep.mubr.f32.mxu0 0.0
      %556 = vmatmul.mubr.f32.gmra.mrb[0].mxu0 %v356
      %v557 = vpop.f32.mrb[0].mxu0
      %v558 = vadd.f32 %v293, %v557
      %v559 = vpop.f32.mrb[0].mxu0
      %560 = vmatprep.mubr.f32.mxu0 0.0
      %561 = vmatmul.mubr.f32.gmra.mrb[0].mxu0 %v359
      %v562 = vpop.f32.mrb[0].mxu0
      %v563 = vadd.f32 %v293, %v562
      %v564 = vpop.f32.mrb[0].mxu0
      %565 = vmatprep.mubr.f32.mxu0 0.0
      %566 = vmatmul.mubr.f32.gmra.mrb[0].mxu0 %v362
      %v567 = vpop.f32.mrb[0].mxu0
      %v568 = vadd.f32 %v293, %v567
      %v569 = vpop.f32.mrb[0].mxu0
      %570 = vmatprep.mubr.f32.mxu0 0.0
      %571 = vmatmul.mubr.f32.gmra.mrb[0].mxu0 %v365
      %v572 = vpop.f32.mrb[0].mxu0
      %v573 = vadd.f32 %v293, %v572
      %v574 = vpop.f32.mrb[0].mxu0
      %575 = vmatprep.mubr.f32.mxu0 0.0
      %576 = vmatmul.mubr.f32.gmra.mrb[0].mxu0 %v368
      %v577 = vpop.f32.mrb[0].mxu0
      %v578 = vadd.f32 %v293, %v577
      %v579 = vpop.f32.mrb[0].mxu0
      %580 = vmatprep.mubr.f32.mxu0 0.0
      %581 = vmatmul.mubr.f32.gmra.mrb[0].mxu0 %v371
      %v582 = vpop.f32.mrb[0].mxu0
      %v583 = vadd.f32 %v293, %v582
      %v584 = vpop.f32.mrb[0].mxu0
      %585 = vmatprep.mubr.f32.mxu0 0.0
      %586 = vmatmul.mubr.f32.gmra.mrb[0].mxu0 %v374
      %v587 = vpop.f32.mrb[0].mxu0
      %v588 = vadd.f32 %v293, %v587
      %v589 = vpop.f32.mrb[0].mxu0
      %590 = vmatprep.mubr.f32.mxu0 0.0
      %591 = vmatmul.mubr.f32.gmra.mrb[0].mxu0 %v377
      %v592 = vpop.f32.mrb[0].mxu0
      %v593 = vadd.f32 %v293, %v592
      %v594 = vpop.f32.mrb[0].mxu0
      %595 = vmatprep.mubr.f32.mxu0 0.0
      %596 = vmatmul.mubr.f32.gmra.mrb[0].mxu0 %v380
      %v597 = vpop.f32.mrb[0].mxu0
      %v598 = vadd.f32 %v293, %v597
      %v599 = vpop.f32.mrb[0].mxu0
      %600 = vmatprep.mubr.f32.mxu0 0.0
      %601 = vmatmul.mubr.f32.gmra.mrb[0].mxu0 %v383
      %v602 = vpop.f32.mrb[0].mxu0
      %v603 = vadd.f32 %v293, %v602
      %v604 = vpop.f32.mrb[0].mxu0
      %605 = vmatprep.mubr.f32.mxu0 0.0
      %606 = vmatmul.mubr.f32.gmra.mrb[0].mxu0 %v386
      %v607 = vpop.f32.mrb[0].mxu0
      %v608 = vadd.f32 %v293, %v607
      %v609 = vpop.f32.mrb[0].mxu0
      %610 = vmatprep.mubr.f32.mxu0 0.0
      %611 = vmatmul.mubr.f32.gmra.mrb[0].mxu0 %v389
      %v612 = vpop.f32.mrb[0].mxu0
      %v613 = vadd.f32 %v293, %v612
      %v614 = vpop.f32.mrb[0].mxu0
      %615 = vdwg.mxu0
      %v616 = vmax.f32 %v458, 0.0
      %v617 = vmax.f32 %v463, 0.0
      %v618 = vmax.f32 %v468, 0.0
      %v619 = vmax.f32 %v473, 0.0
      %v620 = vmax.f32 %v478, 0.0
      %v621 = vmax.f32 %v483, 0.0
      %v622 = vmax.f32 %v488, 0.0
      %v623 = vmax.f32 %v493, 0.0
      %v624 = vmax.f32 %v498, 0.0
      %v625 = vmax.f32 %v503, 0.0
      %v626 = vmax.f32 %v508, 0.0
      %v627 = vmax.f32 %v513, 0.0
      %v628 = vmax.f32 %v518, 0.0
      %v629 = vmax.f32 %v523, 0.0
      %v630 = vmax.f32 %v528, 0.0
      %v631 = vmax.f32 %v533, 0.0
      %v632 = vmax.f32 %v538, 0.0
      %v633 = vmax.f32 %v543, 0.0
      %v634 = vmax.f32 %v548, 0.0
      %v635 = vmax.f32 %v553, 0.0
      %v636 = vmax.f32 %v558, 0.0
      %v637 = vmax.f32 %v563, 0.0
      %v638 = vmax.f32 %v568, 0.0
      %v639 = vmax.f32 %v573, 0.0
      %v640 = vmax.f32 %v578, 0.0
      %v641 = vmax.f32 %v583, 0.0
      %v642 = vmax.f32 %v588, 0.0
      %v643 = vmax.f32 %v593, 0.0
      %v644 = vmax.f32 %v598, 0.0
      %v645 = vmax.f32 %v603, 0.0
      %v646 = vmax.f32 %v608, 0.0
      %v647 = vmax.f32 %v613, 0.0
      %v648 = vld [vmem:[%s2] sm:$0xff]
      %v649 = vld [vmem:[%s2 + $0x8] sm:$0xff]
      %v650 = vld [vmem:[%s2 + $0x10] sm:$0xff]
      %v651 = vld [vmem:[%s2 + $0x18] sm:$0xff]
      %v652 = vld [vmem:[%s2 + $0x20] sm:$0xff]
      %v653 = vld [vmem:[%s2 + $0x28] sm:$0xff]
      %v654 = vld [vmem:[%s2 + $0x30] sm:$0xff]
      %v655 = vld [vmem:[%s2 + $0x38] sm:$0xff]
      %v656 = vld [vmem:[%s2 + $0x40] sm:$0xff]
      %v657 = vld [vmem:[%s2 + $0x48] sm:$0xff]
      %v658 = vld [vmem:[%s2 + $0x50] sm:$0xff]
      %v659 = vld [vmem:[%s2 + $0x58] sm:$0xff]
      %v660 = vld [vmem:[%s2 + $0x60] sm:$0xff]
      %v661 = vld [vmem:[%s2 + $0x68] sm:$0xff]
      %v662 = vld [vmem:[%s2 + $0x70] sm:$0xff]
      %v663 = vld [vmem:[%s2 + $0x78] sm:$0xff]
      %v664 = vld [vmem:[%s4 + $0x1] sm:$0x1]
      %v665 = vlaneseq
      %v666 = vshrl.u32 %v665, 7
      %v667 = vsub.s32 0, %v666
      %v668 = vrot.slane %v664, %v667
      %669 = vmatprep.subr.mxu0 0.0
      %670 = vmatpush1.msra.mxu0 %v648
      %671 = vmatprep.subr.mxu0 0.0
      %672 = vmatpush1.msra.mxu0 %v649
      %673 = vmatprep.subr.mxu0 0.0
      %674 = vmatpush1.msra.mxu0 %v650
      %675 = vmatprep.subr.mxu0 0.0
      %676 = vmatpush1.msra.mxu0 %v651
      %677 = vmatprep.subr.mxu0 0.0
      %678 = vmatpush1.msra.mxu0 %v652
      %679 = vmatprep.subr.mxu0 0.0
      %680 = vmatpush1.msra.mxu0 %v653
      %681 = vmatprep.subr.mxu0 0.0
      %682 = vmatpush1.msra.mxu0 %v654
      %683 = vmatprep.subr.mxu0 0.0
      %684 = vmatpush1.msra.mxu0 %v655
      %685 = vmatprep.subr.mxu0 0.0
      %686 = vmatpush1.msra.mxu0 %v656
      %687 = vmatprep.subr.mxu0 0.0
      %688 = vmatpush1.msra.mxu0 %v657
      %689 = vmatprep.subr.mxu0 0.0
      %690 = vmatpush1.msra.mxu0 %v658
      %691 = vmatprep.subr.mxu0 0.0
      %692 = vmatpush1.msra.mxu0 %v659
      %693 = vmatprep.subr.mxu0 0.0
      %694 = vmatpush1.msra.mxu0 %v660
      %695 = vmatprep.subr.mxu0 0.0
      %696 = vmatpush1.msra.mxu0 %v661
      %697 = vmatprep.subr.mxu0 0.0
      %698 = vmatpush1.msra.mxu0 %v662
      %699 = vmatprep.subr.mxu0 0.0
      %700 = vmatpush1.msra.mxu0 %v663
      %701 = vmatprep.subr.mxu0 0.0
      %702 = vmatpush1.msra.mxu0 0.0
      %703 = vmatprep.subr.mxu0 0.0
      %704 = vmatpush1.msra.mxu0 0.0
      %705 = vmatprep.subr.mxu0 0.0
      %706 = vmatpush1.msra.mxu0 0.0
      %707 = vmatprep.subr.mxu0 0.0
      %708 = vmatpush1.msra.mxu0 0.0
      %709 = vmatprep.subr.mxu0 0.0
      %710 = vmatpush1.msra.mxu0 0.0
      %711 = vmatprep.subr.mxu0 0.0
      %712 = vmatpush1.msra.mxu0 0.0
      %713 = vmatprep.subr.mxu0 0.0
      %714 = vmatpush1.msra.mxu0 0.0
      %715 = vmatprep.subr.mxu0 0.0
      %716 = vmatpush1.msra.mxu0 0.0
      %717 = vmatprep.subr.mxu0 0.0
      %718 = vmatpush1.msra.mxu0 0.0
      %719 = vmatprep.subr.mxu0 0.0
      %720 = vmatpush1.msra.mxu0 0.0
      %721 = vmatprep.subr.mxu0 0.0
      %722 = vmatpush1.msra.mxu0 0.0
      %723 = vmatprep.subr.mxu0 0.0
      %724 = vmatpush1.msra.mxu0 0.0
      %725 = vmatprep.subr.mxu0 0.0
      %726 = vmatpush1.msra.mxu0 0.0
      %727 = vmatprep.subr.mxu0 0.0
      %728 = vmatpush1.msra.mxu0 0.0
      %729 = vmatprep.subr.mxu0 0.0
      %730 = vmatpush1.msra.mxu0 0.0
      %731 = vmatprep.subr.mxu0 0.0
      %732 = vmatpush1.msra.mxu0 0.0
      %733 = vmatprep.mubr.f32.mxu0 0.0
      %734 = vmatmul.mubr.f32.gmra.mrb[0].mxu0 %v616
      %v735 = vpop.f32.mrb[0].mxu0
      %v736 = vadd.f32 %v668, %v735
      %v737 = vpop.f32.mrb[0].mxu0
      %738 = vmatprep.mubr.f32.mxu0 0.0
      %739 = vmatmul.mubr.f32.gmra.mrb[0].mxu0 %v617
      %v740 = vpop.f32.mrb[0].mxu0
      %v741 = vadd.f32 %v668, %v740
      %v742 = vpop.f32.mrb[0].mxu0
      %743 = vmatprep.mubr.f32.mxu0 0.0
      %744 = vmatmul.mubr.f32.gmra.mrb[0].mxu0 %v618
      %v745 = vpop.f32.mrb[0].mxu0
      %v746 = vadd.f32 %v668, %v745
      %v747 = vpop.f32.mrb[0].mxu0
      %748 = vmatprep.mubr.f32.mxu0 0.0
      %749 = vmatmul.mubr.f32.gmra.mrb[0].mxu0 %v619
      %v750 = vpop.f32.mrb[0].mxu0
      %v751 = vadd.f32 %v668, %v750
      %v752 = vpop.f32.mrb[0].mxu0
      %753 = vmatprep.mubr.f32.mxu0 0.0
      %754 = vmatmul.mubr.f32.gmra.mrb[0].mxu0 %v620
      %v755 = vpop.f32.mrb[0].mxu0
      %v756 = vadd.f32 %v668, %v755
      %v757 = vpop.f32.mrb[0].mxu0
      %758 = vmatprep.mubr.f32.mxu0 0.0
      %759 = vmatmul.mubr.f32.gmra.mrb[0].mxu0 %v621
      %v760 = vpop.f32.mrb[0].mxu0
      %v761 = vadd.f32 %v668, %v760
      %v762 = vpop.f32.mrb[0].mxu0
      %763 = vmatprep.mubr.f32.mxu0 0.0
      %764 = vmatmul.mubr.f32.gmra.mrb[0].mxu0 %v622
      %v765 = vpop.f32.mrb[0].mxu0
      %v766 = vadd.f32 %v668, %v765
      %v767 = vpop.f32.mrb[0].mxu0
      %768 = vmatprep.mubr.f32.mxu0 0.0
      %769 = vmatmul.mubr.f32.gmra.mrb[0].mxu0 %v623
      %v770 = vpop.f32.mrb[0].mxu0
      %v771 = vadd.f32 %v668, %v770
      %v772 = vpop.f32.mrb[0].mxu0
      %773 = vmatprep.mubr.f32.mxu0 0.0
      %774 = vmatmul.mubr.f32.gmra.mrb[0].mxu0 %v624
      %v775 = vpop.f32.mrb[0].mxu0
      %v776 = vadd.f32 %v668, %v775
      %v777 = vpop.f32.mrb[0].mxu0
      %778 = vmatprep.mubr.f32.mxu0 0.0
      %779 = vmatmul.mubr.f32.gmra.mrb[0].mxu0 %v625
      %v780 = vpop.f32.mrb[0].mxu0
      %v781 = vadd.f32 %v668, %v780
      %v782 = vpop.f32.mrb[0].mxu0
      %783 = vmatprep.mubr.f32.mxu0 0.0
      %784 = vmatmul.mubr.f32.gmra.mrb[0].mxu0 %v626
      %v785 = vpop.f32.mrb[0].mxu0
      %v786 = vadd.f32 %v668, %v785
      %v787 = vpop.f32.mrb[0].mxu0
      %788 = vmatprep.mubr.f32.mxu0 0.0
      %789 = vmatmul.mubr.f32.gmra.mrb[0].mxu0 %v627
      %v790 = vpop.f32.mrb[0].mxu0
      %v791 = vadd.f32 %v668, %v790
      %v792 = vpop.f32.mrb[0].mxu0
      %793 = vmatprep.mubr.f32.mxu0 0.0
      %794 = vmatmul.mubr.f32.gmra.mrb[0].mxu0 %v628
      %v795 = vpop.f32.mrb[0].mxu0
      %v796 = vadd.f32 %v668, %v795
      %v797 = vpop.f32.mrb[0].mxu0
      %798 = vmatprep.mubr.f32.mxu0 0.0
      %799 = vmatmul.mubr.f32.gmra.mrb[0].mxu0 %v629
      %v800 = vpop.f32.mrb[0].mxu0
      %v801 = vadd.f32 %v668, %v800
      %v802 = vpop.f32.mrb[0].mxu0
      %803 = vmatprep.mubr.f32.mxu0 0.0
      %804 = vmatmul.mubr.f32.gmra.mrb[0].mxu0 %v630
      %v805 = vpop.f32.mrb[0].mxu0
      %v806 = vadd.f32 %v668, %v805
      %v807 = vpop.f32.mrb[0].mxu0
      %808 = vmatprep.mubr.f32.mxu0 0.0
      %809 = vmatmul.mubr.f32.gmra.mrb[0].mxu0 %v631
      %v810 = vpop.f32.mrb[0].mxu0
      %v811 = vadd.f32 %v668, %v810
      %v812 = vpop.f32.mrb[0].mxu0
      %813 = vmatprep.mubr.f32.mxu0 0.0
      %814 = vmatmul.mubr.f32.gmra.mrb[0].mxu0 %v632
      %v815 = vpop.f32.mrb[0].mxu0
      %v816 = vadd.f32 %v668, %v815
      %v817 = vpop.f32.mrb[0].mxu0
      %818 = vmatprep.mubr.f32.mxu0 0.0
      %819 = vmatmul.mubr.f32.gmra.mrb[0].mxu0 %v633
      %v820 = vpop.f32.mrb[0].mxu0
      %v821 = vadd.f32 %v668, %v820
      %v822 = vpop.f32.mrb[0].mxu0
      %823 = vmatprep.mubr.f32.mxu0 0.0
      %824 = vmatmul.mubr.f32.gmra.mrb[0].mxu0 %v634
      %v825 = vpop.f32.mrb[0].mxu0
      %v826 = vadd.f32 %v668, %v825
      %v827 = vpop.f32.mrb[0].mxu0
      %828 = vmatprep.mubr.f32.mxu0 0.0
      %829 = vmatmul.mubr.f32.gmra.mrb[0].mxu0 %v635
      %v830 = vpop.f32.mrb[0].mxu0
      %v831 = vadd.f32 %v668, %v830
      %v832 = vpop.f32.mrb[0].mxu0
      %833 = vmatprep.mubr.f32.mxu0 0.0
      %834 = vmatmul.mubr.f32.gmra.mrb[0].mxu0 %v636
      %v835 = vpop.f32.mrb[0].mxu0
      %v836 = vadd.f32 %v668, %v835
      %v837 = vpop.f32.mrb[0].mxu0
      %838 = vmatprep.mubr.f32.mxu0 0.0
      %839 = vmatmul.mubr.f32.gmra.mrb[0].mxu0 %v637
      %v840 = vpop.f32.mrb[0].mxu0
      %v841 = vadd.f32 %v668, %v840
      %v842 = vpop.f32.mrb[0].mxu0
      %843 = vmatprep.mubr.f32.mxu0 0.0
      %844 = vmatmul.mubr.f32.gmra.mrb[0].mxu0 %v638
      %v845 = vpop.f32.mrb[0].mxu0
      %v846 = vadd.f32 %v668, %v845
      %v847 = vpop.f32.mrb[0].mxu0
      %848 = vmatprep.mubr.f32.mxu0 0.0
      %849 = vmatmul.mubr.f32.gmra.mrb[0].mxu0 %v639
      %v850 = vpop.f32.mrb[0].mxu0
      %v851 = vadd.f32 %v668, %v850
      %v852 = vpop.f32.mrb[0].mxu0
      %853 = vmatprep.mubr.f32.mxu0 0.0
      %854 = vmatmul.mubr.f32.gmra.mrb[0].mxu0 %v640
      %v855 = vpop.f32.mrb[0].mxu0
      %v856 = vadd.f32 %v668, %v855
      %v857 = vpop.f32.mrb[0].mxu0
      %858 = vmatprep.mubr.f32.mxu0 0.0
      %859 = vmatmul.mubr.f32.gmra.mrb[0].mxu0 %v641
      %v860 = vpop.f32.mrb[0].mxu0
      %v861 = vadd.f32 %v668, %v860
      %v862 = vpop.f32.mrb[0].mxu0
      %863 = vmatprep.mubr.f32.mxu0 0.0
      %864 = vmatmul.mubr.f32.gmra.mrb[0].mxu0 %v642
      %v865 = vpop.f32.mrb[0].mxu0
      %v866 = vadd.f32 %v668, %v865
      %v867 = vpop.f32.mrb[0].mxu0
      %868 = vmatprep.mubr.f32.mxu0 0.0
      %869 = vmatmul.mubr.f32.gmra.mrb[0].mxu0 %v643
      %v870 = vpop.f32.mrb[0].mxu0
      %v871 = vadd.f32 %v668, %v870
      %v872 = vpop.f32.mrb[0].mxu0
      %873 = vmatprep.mubr.f32.mxu0 0.0
      %874 = vmatmul.mubr.f32.gmra.mrb[0].mxu0 %v644
      %v875 = vpop.f32.mrb[0].mxu0
      %v876 = vadd.f32 %v668, %v875
      %v877 = vpop.f32.mrb[0].mxu0
      %878 = vmatprep.mubr.f32.mxu0 0.0
      %879 = vmatmul.mubr.f32.gmra.mrb[0].mxu0 %v645
      %v880 = vpop.f32.mrb[0].mxu0
      %v881 = vadd.f32 %v668, %v880
      %v882 = vpop.f32.mrb[0].mxu0
      %883 = vmatprep.mubr.f32.mxu0 0.0
      %884 = vmatmul.mubr.f32.gmra.mrb[0].mxu0 %v646
      %v885 = vpop.f32.mrb[0].mxu0
      %v886 = vadd.f32 %v668, %v885
      %v887 = vpop.f32.mrb[0].mxu0
      %888 = vmatprep.mubr.f32.mxu0 0.0
      %889 = vmatmul.mubr.f32.gmra.mrb[0].mxu0 %v647
      %v890 = vpop.f32.mrb[0].mxu0
      %v891 = vadd.f32 %v668, %v890
      %v892 = vpop.f32.mrb[0].mxu0
      %893 = vdwg.mxu0
      %v894 = vmax.f32 %v736, 0.0
      %v895 = vmax.f32 %v741, 0.0
      %v896 = vmax.f32 %v746, 0.0
      %v897 = vmax.f32 %v751, 0.0
      %v898 = vmax.f32 %v756, 0.0
      %v899 = vmax.f32 %v761, 0.0
      %v900 = vmax.f32 %v766, 0.0
      %v901 = vmax.f32 %v771, 0.0
      %v902 = vmax.f32 %v776, 0.0
      %v903 = vmax.f32 %v781, 0.0
      %v904 = vmax.f32 %v786, 0.0
      %v905 = vmax.f32 %v791, 0.0
      %v906 = vmax.f32 %v796, 0.0
      %v907 = vmax.f32 %v801, 0.0
      %v908 = vmax.f32 %v806, 0.0
      %v909 = vmax.f32 %v811, 0.0
      %v910 = vmax.f32 %v816, 0.0
      %v911 = vmax.f32 %v821, 0.0
      %v912 = vmax.f32 %v826, 0.0
      %v913 = vmax.f32 %v831, 0.0
      %v914 = vmax.f32 %v836, 0.0
      %v915 = vmax.f32 %v841, 0.0
      %v916 = vmax.f32 %v846, 0.0
      %v917 = vmax.f32 %v851, 0.0
      %v918 = vmax.f32 %v856, 0.0
      %v919 = vmax.f32 %v861, 0.0
      %v920 = vmax.f32 %v866, 0.0
      %v921 = vmax.f32 %v871, 0.0
      %v922 = vmax.f32 %v876, 0.0
      %v923 = vmax.f32 %v881, 0.0
      %v924 = vmax.f32 %v886, 0.0
      %v925 = vmax.f32 %v891, 0.0
      %v926 = vld [vmem:[%s3] sm:$0xff]
      %v927 = vld [vmem:[%s3 + $0x8] sm:$0xff]
      %v928 = vld [vmem:[%s3 + $0x10] sm:$0xff]
      %v929 = vld [vmem:[%s3 + $0x18] sm:$0xff]
      %v930 = vld [vmem:[%s3 + $0x20] sm:$0xff]
      %v931 = vld [vmem:[%s3 + $0x28] sm:$0xff]
      %v932 = vld [vmem:[%s3 + $0x30] sm:$0xff]
      %v933 = vld [vmem:[%s3 + $0x38] sm:$0xff]
      %v934 = vld [vmem:[%s3 + $0x40] sm:$0xff]
      %v935 = vld [vmem:[%s3 + $0x48] sm:$0xff]
      %v936 = vld [vmem:[%s3 + $0x50] sm:$0xff]
      %v937 = vld [vmem:[%s3 + $0x58] sm:$0xff]
      %v938 = vld [vmem:[%s3 + $0x60] sm:$0xff]
      %v939 = vld [vmem:[%s3 + $0x68] sm:$0xff]
      %v940 = vld [vmem:[%s3 + $0x70] sm:$0xff]
      %v941 = vld [vmem:[%s3 + $0x78] sm:$0xff]
      %v942 = vld [vmem:[%s5] sm:$0x1]
      %v944 = vlaneseq
      %v945 = vshrl.u32 %v944, 7
      %v946 = vsub.s32 0, %v945
      %v947 = vrot.slane %v942, %v946
      %949 = vmatprep.subr.mxu0 0.0
      %950 = vmatpush1.msra.mxu0 %v926
      %951 = vmatprep.subr.mxu0 0.0
      %952 = vmatpush1.msra.mxu0 %v927
      %953 = vmatprep.subr.mxu0 0.0
      %954 = vmatpush1.msra.mxu0 %v928
      %955 = vmatprep.subr.mxu0 0.0
      %956 = vmatpush1.msra.mxu0 %v929
      %957 = vmatprep.subr.mxu0 0.0
      %958 = vmatpush1.msra.mxu0 %v930
      %959 = vmatprep.subr.mxu0 0.0
      %960 = vmatpush1.msra.mxu0 %v931
      %961 = vmatprep.subr.mxu0 0.0
      %962 = vmatpush1.msra.mxu0 %v932
      %963 = vmatprep.subr.mxu0 0.0
      %964 = vmatpush1.msra.mxu0 %v933
      %965 = vmatprep.subr.mxu0 0.0
      %966 = vmatpush1.msra.mxu0 %v934
      %967 = vmatprep.subr.mxu0 0.0
      %968 = vmatpush1.msra.mxu0 %v935
      %969 = vmatprep.subr.mxu0 0.0
      %970 = vmatpush1.msra.mxu0 %v936
      %971 = vmatprep.subr.mxu0 0.0
      %972 = vmatpush1.msra.mxu0 %v937
      %973 = vmatprep.subr.mxu0 0.0
      %974 = vmatpush1.msra.mxu0 %v938
      %975 = vmatprep.subr.mxu0 0.0
      %976 = vmatpush1.msra.mxu0 %v939
      %977 = vmatprep.subr.mxu0 0.0
      %978 = vmatpush1.msra.mxu0 %v940
      %979 = vmatprep.subr.mxu0 0.0
      %980 = vmatpush1.msra.mxu0 %v941
      %981 = vmatprep.subr.mxu0 0.0
      %982 = vmatpush1.msra.mxu0 0.0
      %983 = vmatprep.subr.mxu0 0.0
      %984 = vmatpush1.msra.mxu0 0.0
      %985 = vmatprep.subr.mxu0 0.0
      %986 = vmatpush1.msra.mxu0 0.0
      %987 = vmatprep.subr.mxu0 0.0
      %988 = vmatpush1.msra.mxu0 0.0
      %989 = vmatprep.subr.mxu0 0.0
      %990 = vmatpush1.msra.mxu0 0.0
      %991 = vmatprep.subr.mxu0 0.0
      %992 = vmatpush1.msra.mxu0 0.0
      %993 = vmatprep.subr.mxu0 0.0
      %994 = vmatpush1.msra.mxu0 0.0
      %995 = vmatprep.subr.mxu0 0.0
      %996 = vmatpush1.msra.mxu0 0.0
      %997 = vmatprep.subr.mxu0 0.0
      %998 = vmatpush1.msra.mxu0 0.0
      %999 = vmatprep.subr.mxu0 0.0
      %1000 = vmatpush1.msra.mxu0 0.0
      %1001 = vmatprep.subr.mxu0 0.0
      %1002 = vmatpush1.msra.mxu0 0.0
      %1003 = vmatprep.subr.mxu0 0.0
      %1004 = vmatpush1.msra.mxu0 0.0
      %1005 = vmatprep.subr.mxu0 0.0
      %1006 = vmatpush1.msra.mxu0 0.0
      %1007 = vmatprep.subr.mxu0 0.0
      %1008 = vmatpush1.msra.mxu0 0.0
      %1009 = vmatprep.subr.mxu0 0.0
      %1010 = vmatpush1.msra.mxu0 0.0
      %1011 = vmatprep.subr.mxu0 0.0
      %1012 = vmatpush1.msra.mxu0 0.0
      %1013 = vmatprep.mubr.f32.mxu0 0.0
      %1014 = vmatmul.mubr.f32.gmra.mrb[0].mxu0 %v894
      %v1015 = vpop.f32.mrb[0].mxu0
      %v1016 = vadd.f32 %v947, %v1015
      %v1017 = vpop.f32.mrb[0].mxu0
      %1018 = vmatprep.mubr.f32.mxu0 0.0
      %1019 = vmatmul.mubr.f32.gmra.mrb[0].mxu0 %v895
      %v1020 = vpop.f32.mrb[0].mxu0
      %v1021 = vadd.f32 %v947, %v1020
      %v1022 = vpop.f32.mrb[0].mxu0
      %1023 = vmatprep.mubr.f32.mxu0 0.0
      %1024 = vmatmul.mubr.f32.gmra.mrb[0].mxu0 %v896
      %v1025 = vpop.f32.mrb[0].mxu0
      %v1026 = vadd.f32 %v947, %v1025
      %v1027 = vpop.f32.mrb[0].mxu0
      %1028 = vmatprep.mubr.f32.mxu0 0.0
      %1029 = vmatmul.mubr.f32.gmra.mrb[0].mxu0 %v897
      %v1030 = vpop.f32.mrb[0].mxu0
      %v1031 = vadd.f32 %v947, %v1030
      %v1032 = vpop.f32.mrb[0].mxu0
      %1033 = vmatprep.mubr.f32.mxu0 0.0
      %1034 = vmatmul.mubr.f32.gmra.mrb[0].mxu0 %v898
      %v1035 = vpop.f32.mrb[0].mxu0
      %v1036 = vadd.f32 %v947, %v1035
      %v1037 = vpop.f32.mrb[0].mxu0
      %1038 = vmatprep.mubr.f32.mxu0 0.0
      %1039 = vmatmul.mubr.f32.gmra.mrb[0].mxu0 %v899
      %v1040 = vpop.f32.mrb[0].mxu0
      %v1041 = vadd.f32 %v947, %v1040
      %v1042 = vpop.f32.mrb[0].mxu0
      %1043 = vmatprep.mubr.f32.mxu0 0.0
      %1044 = vmatmul.mubr.f32.gmra.mrb[0].mxu0 %v900
      %v1045 = vpop.f32.mrb[0].mxu0
      %v1046 = vadd.f32 %v947, %v1045
      %v1047 = vpop.f32.mrb[0].mxu0
      %1048 = vmatprep.mubr.f32.mxu0 0.0
      %1049 = vmatmul.mubr.f32.gmra.mrb[0].mxu0 %v901
      %v1050 = vpop.f32.mrb[0].mxu0
      %v1051 = vadd.f32 %v947, %v1050
      %v1052 = vpop.f32.mrb[0].mxu0
      %1053 = vmatprep.mubr.f32.mxu0 0.0
      %1054 = vmatmul.mubr.f32.gmra.mrb[0].mxu0 %v902
      %v1055 = vpop.f32.mrb[0].mxu0
      %v1056 = vadd.f32 %v947, %v1055
      %v1057 = vpop.f32.mrb[0].mxu0
      %1058 = vmatprep.mubr.f32.mxu0 0.0
      %1059 = vmatmul.mubr.f32.gmra.mrb[0].mxu0 %v903
      %v1060 = vpop.f32.mrb[0].mxu0
      %v1061 = vadd.f32 %v947, %v1060
      %v1062 = vpop.f32.mrb[0].mxu0
      %1063 = vmatprep.mubr.f32.mxu0 0.0
      %1064 = vmatmul.mubr.f32.gmra.mrb[0].mxu0 %v904
      %v1065 = vpop.f32.mrb[0].mxu0
      %v1066 = vadd.f32 %v947, %v1065
      %v1067 = vpop.f32.mrb[0].mxu0
      %1068 = vmatprep.mubr.f32.mxu0 0.0
      %1069 = vmatmul.mubr.f32.gmra.mrb[0].mxu0 %v905
      %v1070 = vpop.f32.mrb[0].mxu0
      %v1071 = vadd.f32 %v947, %v1070
      %v1072 = vpop.f32.mrb[0].mxu0
      %1073 = vmatprep.mubr.f32.mxu0 0.0
      %1074 = vmatmul.mubr.f32.gmra.mrb[0].mxu0 %v906
      %v1075 = vpop.f32.mrb[0].mxu0
      %v1076 = vadd.f32 %v947, %v1075
      %v1077 = vpop.f32.mrb[0].mxu0
      %1078 = vmatprep.mubr.f32.mxu0 0.0
      %1079 = vmatmul.mubr.f32.gmra.mrb[0].mxu0 %v907
      %v1080 = vpop.f32.mrb[0].mxu0
      %v1081 = vadd.f32 %v947, %v1080
      %v1082 = vpop.f32.mrb[0].mxu0
      %1083 = vmatprep.mubr.f32.mxu0 0.0
      %1084 = vmatmul.mubr.f32.gmra.mrb[0].mxu0 %v908
      %v1085 = vpop.f32.mrb[0].mxu0
      %v1086 = vadd.f32 %v947, %v1085
      %v1087 = vpop.f32.mrb[0].mxu0
      %1088 = vmatprep.mubr.f32.mxu0 0.0
      %1089 = vmatmul.mubr.f32.gmra.mrb[0].mxu0 %v909
      %v1090 = vpop.f32.mrb[0].mxu0
      %v1091 = vadd.f32 %v947, %v1090
      %v1092 = vpop.f32.mrb[0].mxu0
      %1093 = vmatprep.mubr.f32.mxu0 0.0
      %1094 = vmatmul.mubr.f32.gmra.mrb[0].mxu0 %v910
      %v1095 = vpop.f32.mrb[0].mxu0
      %v1096 = vadd.f32 %v947, %v1095
      %v1097 = vpop.f32.mrb[0].mxu0
      %1098 = vmatprep.mubr.f32.mxu0 0.0
      %1099 = vmatmul.mubr.f32.gmra.mrb[0].mxu0 %v911
      %v1100 = vpop.f32.mrb[0].mxu0
      %v1101 = vadd.f32 %v947, %v1100
      %v1102 = vpop.f32.mrb[0].mxu0
      %1103 = vmatprep.mubr.f32.mxu0 0.0
      %1104 = vmatmul.mubr.f32.gmra.mrb[0].mxu0 %v912
      %v1105 = vpop.f32.mrb[0].mxu0
      %v1106 = vadd.f32 %v947, %v1105
      %v1107 = vpop.f32.mrb[0].mxu0
      %1108 = vmatprep.mubr.f32.mxu0 0.0
      %1109 = vmatmul.mubr.f32.gmra.mrb[0].mxu0 %v913
      %v1110 = vpop.f32.mrb[0].mxu0
      %v1111 = vadd.f32 %v947, %v1110
      %v1112 = vpop.f32.mrb[0].mxu0
      %1113 = vmatprep.mubr.f32.mxu0 0.0
      %1114 = vmatmul.mubr.f32.gmra.mrb[0].mxu0 %v914
      %v1115 = vpop.f32.mrb[0].mxu0
      %v1116 = vadd.f32 %v947, %v1115
      %v1117 = vpop.f32.mrb[0].mxu0
      %1118 = vmatprep.mubr.f32.mxu0 0.0
      %1119 = vmatmul.mubr.f32.gmra.mrb[0].mxu0 %v915
      %v1120 = vpop.f32.mrb[0].mxu0
      %v1121 = vadd.f32 %v947, %v1120
      %v1122 = vpop.f32.mrb[0].mxu0
      %1123 = vmatprep.mubr.f32.mxu0 0.0
      %1124 = vmatmul.mubr.f32.gmra.mrb[0].mxu0 %v916
      %v1125 = vpop.f32.mrb[0].mxu0
      %v1126 = vadd.f32 %v947, %v1125
      %v1127 = vpop.f32.mrb[0].mxu0
      %1128 = vmatprep.mubr.f32.mxu0 0.0
      %1129 = vmatmul.mubr.f32.gmra.mrb[0].mxu0 %v917
      %v1130 = vpop.f32.mrb[0].mxu0
      %v1131 = vadd.f32 %v947, %v1130
      %v1132 = vpop.f32.mrb[0].mxu0
      %1133 = vmatprep.mubr.f32.mxu0 0.0
      %1134 = vmatmul.mubr.f32.gmra.mrb[0].mxu0 %v918
      %v1135 = vpop.f32.mrb[0].mxu0
      %v1136 = vadd.f32 %v947, %v1135
      %v1137 = vpop.f32.mrb[0].mxu0
      %1138 = vmatprep.mubr.f32.mxu0 0.0
      %1139 = vmatmul.mubr.f32.gmra.mrb[0].mxu0 %v919
      %v1140 = vpop.f32.mrb[0].mxu0
      %v1141 = vadd.f32 %v947, %v1140
      %v1142 = vpop.f32.mrb[0].mxu0
      %1143 = vmatprep.mubr.f32.mxu0 0.0
      %1144 = vmatmul.mubr.f32.gmra.mrb[0].mxu0 %v920
      %v1145 = vpop.f32.mrb[0].mxu0
      %v1146 = vadd.f32 %v947, %v1145
      %v1147 = vpop.f32.mrb[0].mxu0
      %1148 = vmatprep.mubr.f32.mxu0 0.0
      %1149 = vmatmul.mubr.f32.gmra.mrb[0].mxu0 %v921
      %v1150 = vpop.f32.mrb[0].mxu0
      %v1151 = vadd.f32 %v947, %v1150
      %v1152 = vpop.f32.mrb[0].mxu0
      %1153 = vmatprep.mubr.f32.mxu0 0.0
      %1154 = vmatmul.mubr.f32.gmra.mrb[0].mxu0 %v922
      %v1155 = vpop.f32.mrb[0].mxu0
      %v1156 = vadd.f32 %v947, %v1155
      %v1157 = vpop.f32.mrb[0].mxu0
      %1158 = vmatprep.mubr.f32.mxu0 0.0
      %1159 = vmatmul.mubr.f32.gmra.mrb[0].mxu0 %v923
      %v1160 = vpop.f32.mrb[0].mxu0
      %v1161 = vadd.f32 %v947, %v1160
      %v1162 = vpop.f32.mrb[0].mxu0
      %1163 = vmatprep.mubr.f32.mxu0 0.0
      %1164 = vmatmul.mubr.f32.gmra.mrb[0].mxu0 %v924
      %v1165 = vpop.f32.mrb[0].mxu0
      %v1166 = vadd.f32 %v947, %v1165
      %v1167 = vpop.f32.mrb[0].mxu0
      %1168 = vmatprep.mubr.f32.mxu0 0.0
      %1169 = vmatmul.mubr.f32.gmra.mrb[0].mxu0 %v925
      %v1170 = vpop.f32.mrb[0].mxu0
      %v1171 = vadd.f32 %v947, %v1170
      %v1172 = vpop.f32.mrb[0].mxu0
      %1173 = vdwg.mxu0
      %vm1174 = vcmask 64512
      %1175 = vst.msk [vmem:[%s253] sm:$0xff] %vm1174, %v1016
      %1176 = vst.msk [vmem:[%s253 + $0x8] sm:$0xff] %vm1174, %v1021
      %1177 = vst.msk [vmem:[%s253 + $0x10] sm:$0xff] %vm1174, %v1026
      %1178 = vst.msk [vmem:[%s253 + $0x18] sm:$0xff] %vm1174, %v1031
      %1179 = vst.msk [vmem:[%s253 + $0x20] sm:$0xff] %vm1174, %v1036
      %1180 = vst.msk [vmem:[%s253 + $0x28] sm:$0xff] %vm1174, %v1041
      %1181 = vst.msk [vmem:[%s253 + $0x30] sm:$0xff] %vm1174, %v1046
      %1182 = vst.msk [vmem:[%s253 + $0x38] sm:$0xff] %vm1174, %v1051
      %1183 = vst.msk [vmem:[%s253 + $0x40] sm:$0xff] %vm1174, %v1056
      %1184 = vst.msk [vmem:[%s253 + $0x48] sm:$0xff] %vm1174, %v1061
      %1185 = vst.msk [vmem:[%s253 + $0x50] sm:$0xff] %vm1174, %v1066
      %1186 = vst.msk [vmem:[%s253 + $0x58] sm:$0xff] %vm1174, %v1071
      %1187 = vst.msk [vmem:[%s253 + $0x60] sm:$0xff] %vm1174, %v1076
      %1188 = vst.msk [vmem:[%s253 + $0x68] sm:$0xff] %vm1174, %v1081
      %1189 = vst.msk [vmem:[%s253 + $0x70] sm:$0xff] %vm1174, %v1086
      %1190 = vst.msk [vmem:[%s253 + $0x78] sm:$0xff] %vm1174, %v1091
      %1191 = vst.msk [vmem:[%s253 + $0x80] sm:$0xff] %vm1174, %v1096
      %1192 = vst.msk [vmem:[%s253 + $0x88] sm:$0xff] %vm1174, %v1101
      %1193 = vst.msk [vmem:[%s253 + $0x90] sm:$0xff] %vm1174, %v1106
      %1194 = vst.msk [vmem:[%s253 + $0x98] sm:$0xff] %vm1174, %v1111
      %1195 = vst.msk [vmem:[%s253 + $0xa0] sm:$0xff] %vm1174, %v1116
      %1196 = vst.msk [vmem:[%s253 + $0xa8] sm:$0xff] %vm1174, %v1121
      %1197 = vst.msk [vmem:[%s253 + $0xb0] sm:$0xff] %vm1174, %v1126
      %1198 = vst.msk [vmem:[%s253 + $0xb8] sm:$0xff] %vm1174, %v1131
      %1199 = vst.msk [vmem:[%s253 + $0xc0] sm:$0xff] %vm1174, %v1136
      %1200 = vst.msk [vmem:[%s253 + $0xc8] sm:$0xff] %vm1174, %v1141
      %1201 = vst.msk [vmem:[%s253 + $0xd0] sm:$0xff] %vm1174, %v1146
      %1202 = vst.msk [vmem:[%s253 + $0xd8] sm:$0xff] %vm1174, %v1151
      %1203 = vst.msk [vmem:[%s253 + $0xe0] sm:$0xff] %vm1174, %v1156
      %1204 = vst.msk [vmem:[%s253 + $0xe8] sm:$0xff] %vm1174, %v1161
      %1205 = vst.msk [vmem:[%s253 + $0xf0] sm:$0xff] %vm1174, %v1166
      %1206 = vst.msk [vmem:[%s253 + $0xf8] sm:$0xff] %vm1174, %v1171
      %s1207 = smul.u32 32, %s17
      %p1208 = scmp.lt.s32.totalorder %s1207, 127
      %s1209 = scalar_select %p1208, %s1207, 127
      %s1210 = smul.addr %s1209, 8
      %s1211 = scalar_lea.vmem %s6, %s1210
      // Predicated region
      $region45: #{_forward_impl.1} parent=43 // pred_check
        %p1212 = pneg %p166
      $region46: #{_forward_impl.1} parent=43 // pred_check_branch
        %1214 = sbr.rel (%p1212) target = $region48
      $region47: #{_forward_impl.1} parent=43 // pred_region
        %s1215 = smul.u32 32, %s17
      $region48: #{_forward_impl.1} parent=43 // pred_fallthru
        _
    $region44: #{_forward_impl.1} parent=5 // pred_fallthru
      _
    %p1216 = scmp.le.s32.totalorder 2, %s12
    // Predicated region
    $region49: #{_forward_impl.1} parent=5 // pred_check
      %p1217 = pneg %p1216
    $region50: #{_forward_impl.1} parent=5 // pred_check_branch
      %1219 = sbr.rel (%p1217) target = $region52
    $region51: #{_forward_impl.1} parent=5 // pred_region
      %s1220 = ssub.s32 %s12, 2
      // Predicated region
      $region53: #{_forward_impl.1} parent=51 // pred_check
        %p1221 = pneg %p172
      $region54: #{_forward_impl.1} parent=51 // pred_check_branch
        %1223 = sbr.rel (%p1221) target = $region56
      $region55: #{_forward_impl.1} parent=51 // pred_region
        %s1224 = smul.u32 32, %s18
        %p1225 = scmp.lt.s32.totalorder %s1224, 127
        %s1226 = scalar_select %p1225, %s1224, 127
        %s1227 = smul.addr %s1226, 8
        %s1228 = scalar_lea.vmem %s6, %s1227
      $region56: #{_forward_impl.1} parent=51 // pred_fallthru
        _
    $region52: #{_forward_impl.1} parent=5 // pred_fallthru
      _
  $region6: #{_forward_impl.1} parent=0 // loop_footer
    %s16 = sadd.s32 1, %s12
  $region7: #{_forward_impl.1} parent=0 // loop_footer_branch
    %11 = sbr.rel target = $region3
  $region8: #{_forward_impl.1} parent=0 // loop_exit
    _

</llo_original>
